<compile_context>
chip_gen: v5e
topology: v5e:2x2
jax: 0.10.0
libtpu: 0.0.40
codegen_flags: <defaults>
</compile_context>

<pallas_src>
import functools
import math

import jax
import jax.numpy as jnp
from jax.experimental import pallas as pl
from jax.experimental.pallas import tpu as pltpu

HIDDEN = 32
NUM_OBJECTIVES = 1
NUM_LAYERS = 2
BATCH = 2

_ACTIVATIONS = {
    "relu": lambda h: jnp.maximum(h, 0.0),
    # PyTorch nn.GELU defaults to the exact erf form.
    "gelu": lambda h: jax.nn.gelu(h, approximate=False),
    "swish": jax.nn.silu,
    "tanh": jnp.tanh,
}


# --------------------------------------------------------------------------
# Parameter packing: one (rows, lane) f32 slab holding every weight & bias.
# Layout per layer:
#   "dense":   rows [row0, row0+fan_in)  = W (fan_in, fan_out)   (lane-padded)
#              row   row0+fan_in         = b (fan_out,)
#   "vpu_row": row   row0                = W^T (fan_in,)  (last layer, out==1)
#              row   row0+1              = b  (scalar at lane 0)
# --------------------------------------------------------------------------
def pack_params(weights, biases):
    num_layers = len(weights)
    num_obj = weights[-1].shape[1]
    lane = max(
        max(w.shape[1] for w in weights),
        weights[-1].shape[0] if num_obj == 1 else 0,
    )

    rows, layout, row = [], [], 0
    for li, (w, b) in enumerate(zip(weights, biases)):
        fan_in, fan_out = w.shape
        is_last = li == num_layers - 1
        if is_last and fan_out == 1:
            w_row = jnp.zeros((1, lane), jnp.float32).at[0, :fan_in].set(
                w[:, 0].astype(jnp.float32))
            b_row = jnp.zeros((1, lane), jnp.float32).at[0, 0].set(
                b[0].astype(jnp.float32))
            rows += [w_row, b_row]
            layout.append(("vpu_row", row, fan_in, fan_out))
            row += 2
        else:
            w_blk = jnp.zeros((fan_in, lane), jnp.float32).at[:, :fan_out].set(
                w.astype(jnp.float32))
            b_row = jnp.zeros((1, lane), jnp.float32).at[0, :fan_out].set(
                b.astype(jnp.float32))
            rows += [w_blk, b_row]
            layout.append(("dense", row, fan_in, fan_out))
            row += fan_in + 1

    params = jnp.concatenate(rows, axis=0)
    pad = (-params.shape[0]) % 8                      # sublane-align
    if pad:
        params = jnp.concatenate(
            [params, jnp.zeros((pad, params.shape[1]), jnp.float32)], axis=0)
    return params, tuple(layout)


# --------------------------------------------------------------------------
# Kernel: one batch tile per grid step, all layers fused, params resident.
# --------------------------------------------------------------------------
def mlp_reward_kernel(x_ref, params_ref, out_ref, *, layout, activation):
    act = _ACTIVATIONS[activation]
    h = x_ref[...].astype(jnp.float32)                        # (TB, hidden)

    num_layers = len(layout)
    for li, (kind, row0, fan_in, fan_out) in enumerate(layout):
        if kind == "dense":
            w = params_ref[row0:row0 + fan_in, 0:fan_out]     # static slice
            b = params_ref[row0 + fan_in:row0 + fan_in + 1, 0:fan_out]
            h = jnp.dot(h, w, preferred_element_type=jnp.float32) + b
        else:  # "vpu_row": last layer, single output column -> VPU + lane reduce
            w_row = params_ref[row0:row0 + 1, 0:fan_in]       # (1, fan_in)
            b = params_ref[row0 + 1:row0 + 2, 0:1]            # (1, 1)
            h = jnp.sum(h * w_row, axis=-1, keepdims=True) + b
        if li < num_layers - 1:
            h = act(h)
            # TODO(synk): dropout omitted (eval-mode identity semantics).

    out_ref[...] = h.astype(out_ref.dtype)                    # (TB, num_obj)


# --------------------------------------------------------------------------
# Wrapper: packs params, tiles the batch, builds explicit VMEM BlockSpecs.
# --------------------------------------------------------------------------
def mlp_reward_head(x, weights, biases, *, activation="relu", block_rows=1024):
    B, H = x.shape
    num_obj = weights[-1].shape[1]
    params, layout = pack_params(weights, biases)

    # Batch tiling: one tile if small, else `block_rows`-row tiles (mult. of 8).
    if B <= block_rows:
        TB, B_pad = B, B
    else:
        TB = block_rows
        B_pad = ((B + TB - 1) // TB) * TB
    if B_pad != B:
        x = jnp.concatenate([x, jnp.zeros((B_pad - B, H), x.dtype)], axis=0)
    grid = (B_pad // TB,)

    kernel = functools.partial(
        mlp_reward_kernel, layout=layout, activation=activation)

    out = pl.pallas_call(
        kernel,
        grid=grid,
        in_specs=[
            # x tile: streamed & double-buffered across the batch grid.
            pl.BlockSpec((TB, H), lambda i: (i, 0),
                         memory_space=pltpu.MemorySpace.VMEM),
            # packed params: constant block index -> DMA'd once, stays resident.
            pl.BlockSpec(params.shape, lambda i: (0, 0),
                         memory_space=pltpu.MemorySpace.VMEM),
        ],
        out_specs=pl.BlockSpec((TB, num_obj), lambda i: (i, 0),
                               memory_space=pltpu.MemorySpace.VMEM),
        out_shape=jax.ShapeDtypeStruct((B_pad, num_obj), jnp.float32),
        compiler_params=pltpu.CompilerParams(
            # Batch rows are independent -> v7x's two TensorCores split them.
            dimension_semantics=("parallel",),
            # Explicit scoped-VMEM budget; tiles here are KiB-scale so this is
            # ample headroom on v5e/v6e/v7x.
            vmem_limit_bytes=32 * 1024 * 1024,
        ),
    )(x, params)

    return out[:B]


# --------------------------------------------------------------------------
# Pure-JAX reference (PyTorch forward, eval mode).
# --------------------------------------------------------------------------
def reference(x, weights, biases, *, activation="relu"):
    act = _ACTIVATIONS[activation]
    h = x
    for i, (w, b) in enumerate(zip(weights, biases)):
        h = h @ w + b
        if i < len(weights) - 1:
            h = act(h)
    return h


if __name__ == "__main__":
    key = jax.random.PRNGKey(0)
    keys = jax.random.split(key, 2 * NUM_LAYERS + 1)

    x = jax.random.normal(keys[0], (BATCH, HIDDEN), jnp.float32)

    # Layer sizes exactly as the module __init__ builds them:
    #   hidden -> hidden // 2**(i+1) -> ... -> num_objectives
    sizes = [HIDDEN]
    for i in range(NUM_LAYERS - 1):
        sizes.append(HIDDEN // 2 ** (i + 1))
    sizes.append(NUM_OBJECTIVES)

    weights, biases = [], []
    for li in range(NUM_LAYERS):
        fan_in, fan_out = sizes[li], sizes[li + 1]
        w = jax.random.normal(keys[1 + 2 * li], (fan_in, fan_out),
                              jnp.float32) / math.sqrt(fan_in)
        b = jax.random.normal(keys[2 + 2 * li], (fan_out,), jnp.float32) * 0.01
        weights.append(w)
        biases.append(b)

    out = mlp_reward_head(x, weights, biases, activation="relu")
    out = jax.block_until_ready(out)

    ref = jax.block_until_ready(reference(x, weights, biases, activation="relu"))
    assert out.shape == (BATCH, NUM_OBJECTIVES), out.shape
    assert jnp.allclose(out, ref, rtol=1e-4, atol=1e-5), (out, ref)

    print("KERNEL_OK")
</pallas_src>

<mosaic_0001>
module attributes {stable_mosaic.version = 11 : i64} {
  func.func @mlp_reward_kernel(%arg0: i32, %arg1: memref<2x32xf32, #tpu.memory_space<vmem>>, %arg2: memref<40x16xf32, #tpu.memory_space<vmem>>, %arg3: memref<2x1xf32, #tpu.memory_space<vmem>>) attributes {dimension_semantics = [#tpu.dimension_semantics<parallel>], iteration_bounds = array<i64: 1>, scalar_prefetch = 0 : i64, scratch_operands = 0 : i64, tpu.core_type = #tpu.core_type<tc>, window_params = [{transform_indices = @transform_0, window_bounds = array<i64: 2, 32>}, {pipeline_mode = #tpu.pipeline_mode<synchronous>, transform_indices = @transform_1, window_bounds = array<i64: 40, 16>}, {transform_indices = @transform_2, window_bounds = array<i64: 2, 1>}]} {
    %c0 = arith.constant 0 : index
    %c0_0 = arith.constant 0 : index
    %0 = vector.load %arg1[%c0, %c0_0] : memref<2x32xf32, #tpu.memory_space<vmem>>, vector<2x32xf32>
    %c0_1 = arith.constant 0 : index
    %c0_2 = arith.constant 0 : index
    %1 = vector.load %arg2[%c0_1, %c0_2] : memref<40x16xf32, #tpu.memory_space<vmem>>, vector<32x16xf32>
    %c32 = arith.constant 32 : index
    %c0_3 = arith.constant 0 : index
    %2 = vector.load %arg2[%c32, %c0_3] : memref<40x16xf32, #tpu.memory_space<vmem>>, vector<1x16xf32>
    %cst = arith.constant dense<0.000000e+00> : vector<2x16xf32>
    %3 = tpu.matmul %0, %1, %cst {dimension_numbers = #tpu.dot_dimension_numbers<[1], [0], [0], [1], [0, 0, 1, 1], [], []>} : vector<2x32xf32>, vector<32x16xf32>, vector<2x16xf32> -> vector<2x16xf32>
    %4 = vector.broadcast %2 : vector<1x16xf32> to vector<2x16xf32>
    %5 = arith.addf %3, %4 : vector<2x16xf32>
    %cst_4 = arith.constant 0.000000e+00 : f32
    %6 = vector.broadcast %cst_4 : f32 to vector<2x16xf32>
    %7 = arith.maximumf %5, %6 : vector<2x16xf32>
    %c33 = arith.constant 33 : index
    %c0_5 = arith.constant 0 : index
    %8 = vector.load %arg2[%c33, %c0_5] : memref<40x16xf32, #tpu.memory_space<vmem>>, vector<1x16xf32>
    %c34 = arith.constant 34 : index
    %c0_6 = arith.constant 0 : index
    %9 = vector.load %arg2[%c34, %c0_6] : memref<40x16xf32, #tpu.memory_space<vmem>>, vector<1x1xf32>
    %10 = vector.broadcast %8 : vector<1x16xf32> to vector<2x16xf32>
    %11 = arith.mulf %7, %10 : vector<2x16xf32>
    %cst_7 = arith.constant dense<0.000000e+00> : vector<2xf32>
    %12 = vector.multi_reduction <add>, %11, %cst_7 [1] : vector<2x16xf32> to vector<2xf32>
    %13 = vector.shape_cast %12 : vector<2xf32> to vector<2x1xf32>
    %14 = vector.broadcast %9 : vector<1x1xf32> to vector<2x1xf32>
    %15 = arith.addf %13, %14 : vector<2x1xf32>
    %c0_8 = arith.constant 0 : index
    %c0_9 = arith.constant 0 : index
    %16 = vector.load %arg3[%c0_8, %c0_9] : memref<2x1xf32, #tpu.memory_space<vmem>>, vector<2x1xf32>
    tpu.vector_store %arg3[%c0_8, %c0_9], %15 {strides = array<i32>} : memref<2x1xf32, #tpu.memory_space<vmem>>, vector<2x1xf32>,
    return
  }
  func.func @transform_0(%arg0: i32) -> (i32, i32) {
    %c0_i32 = arith.constant 0 : i32
    %c0_i32_0 = arith.constant 0 : i32
    return %arg0, %c0_i32 : i32, i32
  }
  func.func @transform_1(%arg0: i32) -> (i32, i32) {
    %c0_i32 = arith.constant 0 : i32
    %c0_i32_0 = arith.constant 0 : i32
    %c0_i32_1 = arith.constant 0 : i32
    return %c0_i32, %c0_i32_0 : i32, i32
  }
  func.func @transform_2(%arg0: i32) -> (i32, i32) {
    %c0_i32 = arith.constant 0 : i32
    %c0_i32_0 = arith.constant 0 : i32
    return %arg0, %c0_i32 : i32, i32
  }
}

</mosaic_0001>

<llo_original>
// kernel: tpu_custom_call.1
$region0: #{tpu_custom_call.1}
  #allocation0 [shape = 'u32[]', space=smem, size = 0x4, offset = 0x4, fixed_abs, tag = 'smem constant byte address 0x4 - core index']
  #allocation1 [shape = 'u32[72,128]{1,0:T(1,128)}', space=vmem, size = 0x9000, scoped, tag = 'internal scratch']
  %s0 = inlined_call_operand.vmem [shape: f32[2,32], index: 0, kind: input, shape index: {}]
  %s1 = inlined_call_operand.vmem [shape: f32[40,16], index: 1, kind: input, shape index: {}]
  %s2 = inlined_call_operand.vmem [shape: f32[2,1], index: 2, kind: output, shape index: {}]
  %s3 = sld [smem:[#allocation0]]
  $region18: #{tpu_custom_call.1} parent=0
    _
  %s5 = ssub.s32 1, %s3
  %s6 = scalar_select 0, %s5, %s3
  // Predicated region
  $region2: #{tpu_custom_call.1} parent=0 // pred_check
    _
  $region3: #{tpu_custom_call.1} parent=0 // pred_check_branch
    %8 = sbr.rel (0) target = $region5
  $region4: #{tpu_custom_call.1} parent=0 // pred_region
    _
  $region5: #{tpu_custom_call.1} parent=0 // pred_fallthru
    _
  // Predicated region
  $region6: #{tpu_custom_call.1} parent=0 // pred_check
    _
  $region7: #{tpu_custom_call.1} parent=0 // pred_check_branch
    %10 = sbr.rel (0) target = $region9
  $region8: #{tpu_custom_call.1} parent=0 // pred_region
    _
  $region9: #{tpu_custom_call.1} parent=0 // pred_fallthru
    _
  %v11 = vld [vmem:[%s0] sm:$0x3]
  %v12 = vld [vmem:[%s1] sm:$0xff]
  %v13 = vld [vmem:[%s1 + $0x8] sm:$0xff]
  %v14 = vld [vmem:[%s1 + $0x10] sm:$0xff]
  %v15 = vld [vmem:[%s1 + $0x18] sm:$0xff]
  %v16 = vld [vmem:[%s1 + $0x20] sm:$0x1]
  %v17 = vperm.slane %v16, 0
  %vm18 = vcmask 261120
  %v20 = vsel %vm18, %v11, 0
  %22 = vmatpush.msra.mxu0 0.0
  %23 = vmatpush.msra.mxu0 0.0
  %24 = vmatpush.msra.mxu0 0.0
  %25 = vmatpush.msra.mxu0 0.0
  %26 = vmatpush.msra.mxu0 0.0
  %27 = vmatpush.msra.mxu0 0.0
  %28 = vmatpush.msra.mxu0 0.0
  %29 = vmatpush.msra.mxu0 0.0
  %30 = vmatpush.msra.mxu0 0.0
  %31 = vmatpush.msra.mxu0 0.0
  %32 = vmatpush.msra.mxu0 0.0
  %33 = vmatpush.msra.mxu0 0.0
  %34 = vmatpush.msra.mxu0 %v15
  %35 = vmatpush.msra.mxu0 %v14
  %36 = vmatpush.msra.mxu0 %v13
  %37 = vmatpush.msra.mxu0 %v12
  %38 = vmatmul.f32.gmra.mxu0 %v20
  %v39 = vpop.f32.mrf.mxu0
  %v40 = vadd.f32 %v17, %v39
  %41 = vdwg.mxu0
  %v42 = vmax.f32 %v40, 0.0
  %v43 = vld [vmem:[%s1 + $0x21] sm:$0x1]
  %v44 = vld [vmem:[%s1 + $0x22] sm:$0x1]
  %v45 = vperm.slane %v43, 0
  %v46 = vmul.f32 %v42, %v45
  %vm47 = vcmask 123904
  %v48 = vsel %vm47, %v46, 0.0
  %49 = vadd.xlane.f32.xlu0 %v48
  %v50 = vpop.xlane.xlu0 %49
  %v51 = vperm.slane %v44, 0
  %v52 = vadd.f32 %v50, %v51
  %vm53 = vcmask 1024
  %54 = vst.msk [vmem:[%s2] sm:$0x3] %vm53, %v52
  // Predicated region
  $region10: #{tpu_custom_call.1} parent=0 // pred_check
    _
  $region11: #{tpu_custom_call.1} parent=0 // pred_check_branch
    %56 = sbr.rel (0) target = $region13
  $region12: #{tpu_custom_call.1} parent=0 // pred_region
    _
  $region13: #{tpu_custom_call.1} parent=0 // pred_fallthru
    _
  // Predicated region
  $region14: #{tpu_custom_call.1} parent=0 // pred_check
    _
  $region15: #{tpu_custom_call.1} parent=0 // pred_check_branch
    %58 = sbr.rel (0) target = $region17
  $region16: #{tpu_custom_call.1} parent=0 // pred_region
    _
  $region17: #{tpu_custom_call.1} parent=0 // pred_fallthru
    _

</llo_original>
